<compile_context>
chip_gen: v7x
topology: tpu7x:2x2x1
jax: 0.10.0
libtpu: 0.0.40
codegen_flags: <defaults>
</compile_context>

<pallas_src>
import functools
import math

import jax
import jax.numpy as jnp
from jax.experimental import pallas as pl
from jax.experimental.pallas import tpu as pltpu


def _resblock_kernel(swish_c, x_ref, w1_ref, b1_ref, w2_ref, b2_ref, out_ref):
    """One batch tile: out = x + W2'( swish( W1'( LN_stats(x) ) ) ).

    The LayerNorm affine (gamma, beta) is folded into W1'/b1', the Swish /1.1
    is folded into W2', and swish_c = softplus(swish_beta) is a static scalar.
    """
    x = x_ref[...].astype(jnp.float32)                     # (TB, D), f32
    inv_d = 1.0 / x.shape[-1]

    # ---- LayerNorm statistics (two-pass, biased variance, eps=1e-5) ----
    mu = jnp.sum(x, axis=-1, keepdims=True) * inv_d
    xc = x - mu
    var = jnp.sum(xc * xc, axis=-1, keepdims=True) * inv_d
    x_hat = xc * jax.lax.rsqrt(var + 1e-5)                 # affine folded into W1'

    # ---- linear1 (bf16 operands, f32 accumulation on the MXU) ----
    e = jnp.dot(x_hat.astype(jnp.bfloat16), w1_ref[...],
                preferred_element_type=jnp.float32) + b1_ref[...]

    # ---- Swish: e * sigmoid(e * softplus(beta));  /1.1 folded into W2' ----
    a = e * jax.nn.sigmoid(e * swish_c)

    # ---- linear2 (bf16 operands, f32 accumulation) ----
    eta = jnp.dot(a.astype(jnp.bfloat16), w2_ref[...],
                  preferred_element_type=jnp.float32) + b2_ref[...]

    # ---- residual: re-read x from VMEM (cheap vld) instead of pinning it ----
    out_ref[...] = (x_ref[...].astype(jnp.float32) + eta).astype(out_ref.dtype)


def _choose_batch_tile(B, block_b):
    """Sublane-aligned batch tile; keeps >= 2 grid steps when B is large so
    v7x's second TensorCore gets work (cheap on single-TC chips)."""
    b8 = max(8, ((B + 7) // 8) * 8)          # whole batch, rounded up to 8
    tb = min(block_b, b8)
    if b8 > 16:                              # enough work to split
        tb_half = ((pl.cdiv(B, 2) + 7) // 8) * 8
        tb = min(tb, tb_half)
    return max(8, tb)


def resblock_forward(x, kernel_params, swish_c, *, block_b=512):
    """x: (B, D) f32.  kernel_params: (w1'_bf16, b1', w2'_bf16, b2)."""
    w1, b1, w2, b2 = kernel_params
    B, D = x.shape
    H = w1.shape[1]

    tb = _choose_batch_tile(B, block_b)
    grid = (pl.cdiv(B, tb),)                 # ragged last block handled by Pallas

    # VMEM working set: activation tiles + resident weight/bias blocks,
    # x2 for default double-buffering, + f32 elementwise temps, + headroom.
    block_bytes = (2 * tb * D * 4            # x tile + out tile (f32)
                   + D * H * 2 + H * 4       # w1' (bf16), b1'
                   + H * D * 2 + D * 4)      # w2' (bf16), b2
    temp_bytes = 3 * tb * H * 4              # e / a / intermediates (f32)
    try:
        vmem_cap = int(pltpu.get_tpu_info().vmem_capacity_bytes)
    except Exception:                        # pragma: no cover
        vmem_cap = 64 << 20                  # most conservative (v7x physical)
    vmem_limit = int(min(int(vmem_cap * 3 // 4),
                         max(16 << 20, 2 * block_bytes + temp_bytes + (2 << 20))))

    cost = pl.CostEstimate(
        flops=4 * B * D * H + 12 * B * D,        # two matmuls + LN/swish/residual
        transcendentals=B * H + B,               # sigmoid on (B,H) + rsqrt per row
        bytes_accessed=(2 * B * D * 4            # x in, out
                        + 2 * D * H * 2          # bf16 weights
                        + (H + D) * 4),          # biases
    )

    kernel = functools.partial(_resblock_kernel, swish_c)

    out = pl.pallas_call(
        kernel,
        out_shape=jax.ShapeDtypeStruct((B, D), jnp.float32),
        grid_spec=pltpu.PrefetchScalarGridSpec(
            num_scalar_prefetch=0,
            grid=grid,
            in_specs=[
                pl.BlockSpec((tb, D), lambda i: (i, 0)),   # x: streamed per tile
                pl.BlockSpec((D, H), lambda i: (0, 0)),    # w1' bf16 (resident)
                pl.BlockSpec((1, H), lambda i: (0, 0)),    # b1'      (resident)
                pl.BlockSpec((H, D), lambda i: (0, 0)),    # w2' bf16 (resident)
                pl.BlockSpec((1, D), lambda i: (0, 0)),    # b2       (resident)
            ],
            out_specs=pl.BlockSpec((tb, D), lambda i: (i, 0)),
        ),
        compiler_params=pltpu.CompilerParams(
            dimension_semantics=("parallel",),             # megacore split on v7x
            vmem_limit_bytes=vmem_limit,
        ),
        cost_estimate=cost,
    )(x, w1, b1, w2, b2)

    return out


def init_resblock_params(key, input_dim, hidden_dim):
    """PyTorch-default-style init.

    Returns:
      ref_params    : f32, un-folded params mirroring the PyTorch module
                      (for the pure-JAX reference check).
      kernel_params : folded params in kernel argument order:
                      (gamma*W1 bf16, b1+beta@W1 f32, W2/1.1 bf16, b2 f32).
                      NOTE: the LN affine and the /1.1 are folded into bf16
                      weights; a trained-checkpoint port must fold *before*
                      quantizing (do not double-quantize).
      swish_c       : python float, softplus(swish_beta).
    """
    def linear(k, fan_in, fan_out):
        kw, kb = jax.random.split(k)
        bound = 1.0 / math.sqrt(fan_in)
        w = jax.random.uniform(kw, (fan_in, fan_out), jnp.float32, -bound, bound)
        b = jax.random.uniform(kb, (1, fan_out), jnp.float32, -bound, bound)
        return w, b

    k1, k2 = jax.random.split(key)
    w1, b1 = linear(k1, input_dim, hidden_dim)       # linear1: (in -> hidden)
    w2, b2 = linear(k2, hidden_dim, input_dim)       # linear2: (hidden -> in)
    gamma = jnp.ones((1, input_dim), jnp.float32)    # LayerNorm weight
    beta_ln = jnp.zeros((1, input_dim), jnp.float32) # LayerNorm bias
    swish_beta = jnp.full((1,), 0.5, jnp.float32)    # Swish beta init

    ref_params = (gamma, beta_ln, w1, b1, w2, b2, swish_beta)

    swish_c = float(math.log1p(math.exp(0.5)))       # softplus(0.5)

    # One-time weight transforms (runtime-free):
    w1_folded = gamma.reshape(input_dim, 1) * w1     # fold LN gamma into W1
    b1_folded = b1 + beta_ln @ w1                    # fold LN beta into b1
    w2_folded = w2 / 1.1                             # fold Swish /1.1 into W2
    kernel_params = (
        w1_folded.astype(jnp.bfloat16),
        b1_folded,
        w2_folded.astype(jnp.bfloat16),
        b2,
    )
    return ref_params, kernel_params, swish_c


def resblock_reference(x, ref_params):
    """Pure-JAX f32 reference mirroring the PyTorch forward exactly."""
    gamma, beta_ln, w1, b1, w2, b2, swish_beta = ref_params
    mu = jnp.mean(x, axis=-1, keepdims=True)
    var = jnp.mean((x - mu) ** 2, axis=-1, keepdims=True)
    n = (x - mu) / jnp.sqrt(var + 1e-5) * gamma + beta_ln
    e = n @ w1 + b1
    e = e * jax.nn.sigmoid(e * jnp.log1p(jnp.exp(swish_beta[0]))) / 1.1
    eta = e @ w2 + b2
    return x + eta


if __name__ == "__main__":
    # Small but lane/MXU-aligned shapes (lanes multiple of 128, hidden multiple
    # of 256).  B=256 -> tile=128, grid=(2,) which also exercises megacore.
    B = 256
    input_dim = 128
    hidden_dim = 256

    key = jax.random.PRNGKey(0)
    kx, kp = jax.random.split(key)
    x = jax.random.normal(kx, (B, input_dim), jnp.float32)
    ref_params, kernel_params, swish_c = init_resblock_params(
        kp, input_dim, hidden_dim)

    out = resblock_forward(x, kernel_params, swish_c)
    out = jax.block_until_ready(out)

    ref = resblock_reference(x, ref_params)
    assert out.shape == (B, input_dim)
    # bf16 weights / dot operands with f32 accumulation vs. a pure-f32
    # reference => loosened tolerance.
    assert jnp.allclose(out, ref, atol=2e-2, rtol=2e-2), "mismatch vs reference"

    print("KERNEL_OK")
</pallas_src>

<mosaic_0001>
module attributes {stable_mosaic.version = 11 : i64} {
  func.func @_resblock_kernel(%arg0: i32, %arg1: memref<128x128xf32, #tpu.memory_space<vmem>>, %arg2: memref<128x256xbf16, #tpu.memory_space<vmem>>, %arg3: memref<1x256xf32, #tpu.memory_space<vmem>>, %arg4: memref<256x128xbf16, #tpu.memory_space<vmem>>, %arg5: memref<1x128xf32, #tpu.memory_space<vmem>>, %arg6: memref<128x128xf32, #tpu.memory_space<vmem>>) attributes {dimension_semantics = [#tpu.dimension_semantics<parallel>], iteration_bounds = array<i64: 2>, scalar_prefetch = 0 : i64, scratch_operands = 0 : i64, tpu.core_type = #tpu.core_type<tc>, window_params = [{transform_indices = @transform_0, window_bounds = array<i64: 128, 128>}, {pipeline_mode = #tpu.pipeline_mode<synchronous>, transform_indices = @transform_1, window_bounds = array<i64: 128, 256>}, {pipeline_mode = #tpu.pipeline_mode<synchronous>, transform_indices = @transform_2, window_bounds = array<i64: 1, 256>}, {pipeline_mode = #tpu.pipeline_mode<synchronous>, transform_indices = @transform_3, window_bounds = array<i64: 256, 128>}, {pipeline_mode = #tpu.pipeline_mode<synchronous>, transform_indices = @transform_4, window_bounds = array<i64: 1, 128>}, {transform_indices = @transform_5, window_bounds = array<i64: 128, 128>}]} {
    %c0 = arith.constant 0 : index
    %c0_0 = arith.constant 0 : index
    %0 = vector.load %arg1[%c0, %c0_0] : memref<128x128xf32, #tpu.memory_space<vmem>>, vector<128x128xf32>
    %cst = arith.constant dense<0.000000e+00> : vector<128xf32>
    %1 = vector.multi_reduction <add>, %0, %cst [1] : vector<128x128xf32> to vector<128xf32>
    %2 = vector.shape_cast %1 : vector<128xf32> to vector<128x1xf32>
    %cst_1 = arith.constant 7.812500e-03 : f32
    %3 = vector.broadcast %cst_1 : f32 to vector<128x1xf32>
    %4 = arith.mulf %2, %3 : vector<128x1xf32>
    %5 = vector.broadcast %4 : vector<128x1xf32> to vector<128x128xf32>
    %6 = arith.subf %0, %5 : vector<128x128xf32>
    %7 = arith.mulf %6, %6 : vector<128x128xf32>
    %cst_2 = arith.constant dense<0.000000e+00> : vector<128xf32>
    %8 = vector.multi_reduction <add>, %7, %cst_2 [1] : vector<128x128xf32> to vector<128xf32>
    %9 = vector.shape_cast %8 : vector<128xf32> to vector<128x1xf32>
    %cst_3 = arith.constant 7.812500e-03 : f32
    %10 = vector.broadcast %cst_3 : f32 to vector<128x1xf32>
    %11 = arith.mulf %9, %10 : vector<128x1xf32>
    %cst_4 = arith.constant 9.99999974E-6 : f32
    %12 = vector.broadcast %cst_4 : f32 to vector<128x1xf32>
    %13 = arith.addf %11, %12 : vector<128x1xf32>
    %14 = math.rsqrt %13 : vector<128x1xf32>
    %15 = vector.broadcast %14 : vector<128x1xf32> to vector<128x128xf32>
    %16 = arith.mulf %6, %15 : vector<128x128xf32>
    %17 = arith.truncf %16 : vector<128x128xf32> to vector<128x128xbf16>
    %c0_5 = arith.constant 0 : index
    %c0_6 = arith.constant 0 : index
    %18 = vector.load %arg2[%c0_5, %c0_6] : memref<128x256xbf16, #tpu.memory_space<vmem>>, vector<128x256xbf16>
    %cst_7 = arith.constant dense<0.000000e+00> : vector<128x256xf32>
    %19 = tpu.matmul %17, %18, %cst_7 {dimension_numbers = #tpu.dot_dimension_numbers<[1], [0], [0], [1], [0, 0, 1, 1], [], []>} : vector<128x128xbf16>, vector<128x256xbf16>, vector<128x256xf32> -> vector<128x256xf32>
    %c0_8 = arith.constant 0 : index
    %c0_9 = arith.constant 0 : index
    %20 = vector.load %arg3[%c0_8, %c0_9] : memref<1x256xf32, #tpu.memory_space<vmem>>, vector<1x256xf32>
    %21 = vector.broadcast %20 : vector<1x256xf32> to vector<128x256xf32>
    %22 = arith.addf %19, %21 : vector<128x256xf32>
    %cst_10 = arith.constant 0.974076986 : f32
    %23 = vector.broadcast %cst_10 : f32 to vector<128x256xf32>
    %24 = arith.mulf %22, %23 : vector<128x256xf32>
    %25 = arith.negf %24 : vector<128x256xf32>
    %26 = math.exp %25 : vector<128x256xf32>
    %cst_11 = arith.constant 1.000000e+00 : f32
    %27 = vector.broadcast %cst_11 : f32 to vector<128x256xf32>
    %28 = arith.addf %27, %26 : vector<128x256xf32>
    %29 = arith.divf %27, %28 : vector<128x256xf32>
    %30 = arith.mulf %22, %29 : vector<128x256xf32>
    %31 = arith.truncf %30 : vector<128x256xf32> to vector<128x256xbf16>
    %c0_12 = arith.constant 0 : index
    %c0_13 = arith.constant 0 : index
    %32 = vector.load %arg4[%c0_12, %c0_13] : memref<256x128xbf16, #tpu.memory_space<vmem>>, vector<256x128xbf16>
    %cst_14 = arith.constant dense<0.000000e+00> : vector<128x128xf32>
    %33 = tpu.matmul %31, %32, %cst_14 {dimension_numbers = #tpu.dot_dimension_numbers<[1], [0], [0], [1], [0, 0, 1, 1], [], []>} : vector<128x256xbf16>, vector<256x128xbf16>, vector<128x128xf32> -> vector<128x128xf32>
    %c0_15 = arith.constant 0 : index
    %c0_16 = arith.constant 0 : index
    %34 = vector.load %arg5[%c0_15, %c0_16] : memref<1x128xf32, #tpu.memory_space<vmem>>, vector<1x128xf32>
    %35 = vector.broadcast %34 : vector<1x128xf32> to vector<128x128xf32>
    %36 = arith.addf %33, %35 : vector<128x128xf32>
    %c0_17 = arith.constant 0 : index
    %c0_18 = arith.constant 0 : index
    %37 = vector.load %arg1[%c0_17, %c0_18] : memref<128x128xf32, #tpu.memory_space<vmem>>, vector<128x128xf32>
    %38 = arith.addf %37, %36 : vector<128x128xf32>
    %c0_19 = arith.constant 0 : index
    %c0_20 = arith.constant 0 : index
    %39 = vector.load %arg6[%c0_19, %c0_20] : memref<128x128xf32, #tpu.memory_space<vmem>>, vector<128x128xf32>
    tpu.vector_store %arg6[%c0_19, %c0_20], %38 {strides = array<i32>} : memref<128x128xf32, #tpu.memory_space<vmem>>, vector<128x128xf32>,
    return
  }
  func.func @transform_0(%arg0: i32) -> (i32, i32) {
    %c0_i32 = arith.constant 0 : i32
    %c0_i32_0 = arith.constant 0 : i32
    return %arg0, %c0_i32 : i32, i32
  }
  func.func @transform_1(%arg0: i32) -> (i32, i32) {
    %c0_i32 = arith.constant 0 : i32
    %c0_i32_0 = arith.constant 0 : i32
    %c0_i32_1 = arith.constant 0 : i32
    return %c0_i32, %c0_i32_0 : i32, i32
  }
  func.func @transform_2(%arg0: i32) -> (i32, i32) {
    %c0_i32 = arith.constant 0 : i32
    %c0_i32_0 = arith.constant 0 : i32
    %c0_i32_1 = arith.constant 0 : i32
    return %c0_i32, %c0_i32_0 : i32, i32
  }
  func.func @transform_3(%arg0: i32) -> (i32, i32) {
    %c0_i32 = arith.constant 0 : i32
    %c0_i32_0 = arith.constant 0 : i32
    %c0_i32_1 = arith.constant 0 : i32
    return %c0_i32, %c0_i32_0 : i32, i32
  }
  func.func @transform_4(%arg0: i32) -> (i32, i32) {
    %c0_i32 = arith.constant 0 : i32
    %c0_i32_0 = arith.constant 0 : i32
    %c0_i32_1 = arith.constant 0 : i32
    return %c0_i32, %c0_i32_0 : i32, i32
  }
  func.func @transform_5(%arg0: i32) -> (i32, i32) {
    %c0_i32 = arith.constant 0 : i32
    %c0_i32_0 = arith.constant 0 : i32
    return %arg0, %c0_i32 : i32, i32
  }
}

</mosaic_0001>

<llo_original>
// kernel: tpu_custom_call.1
$region0: #{tpu_custom_call.1}
  #allocation0 [shape = 'u32[]', space=smem, size = 0x4, offset = 0x4, fixed_abs, tag = 'smem constant byte address 0x4 - core index']
  #allocation1 [shape = 'u32[144,128]{1,0:T(1,128)}', space=vmem, size = 0x12000, scoped, tag = 'internal scratch']
  %s0 = inlined_call_operand.hbm [shape: f32[256,128], index: 0, kind: input, shape index: {}]
  %s1 = inlined_call_operand.hbm [shape: bf16[128,256], index: 1, kind: input, shape index: {}]
  %s2 = inlined_call_operand.vmem [shape: f32[1,256], index: 2, kind: input, shape index: {}]
  %s3 = inlined_call_operand.hbm [shape: bf16[256,128], index: 3, kind: input, shape index: {}]
  %s4 = inlined_call_operand.vmem [shape: f32[1,128], index: 4, kind: input, shape index: {}]
  %s5 = inlined_call_operand.hbm [shape: f32[256,128], index: 5, kind: output, shape index: {}]
  %s6 = sld [smem:[#allocation0]]
  $region65: #{tpu_custom_call.1} parent=0
    _
  %s8 = ssub.s32 1, %s6
  %s9 = scalar_select 0, %s8, %s6
  $region1: #{tpu_custom_call.1} parent=0
    #allocation2 [shape = 'u8[131072]{0}', space=vmem, size = 0x20000, scoped, tag = 'input window, operand 0']
    #allocation3 [shape = 's32[2]{0}', space=sflag, size = 0x8, scoped, tag = 'scoped memory for tpu_custom_call.1']
    #allocation4 [shape = 's32[2]{0}', space=sflag, size = 0x8, scoped, tag = 'scoped memory for tpu_custom_call.1']
    #allocation5 [shape = 'u8[65536]{0}', space=vmem, size = 0x10000, scoped, tag = 'input window, operand 1, single buffered']
    #allocation6 [shape = 's32[1]{0}', space=sflag, size = 0x4, scoped, tag = 'scoped memory for tpu_custom_call.1']
    #allocation7 [shape = 'u8[65536]{0}', space=vmem, size = 0x10000, scoped, tag = 'input window, operand 3, single buffered']
    #allocation8 [shape = 'u8[131072]{0}', space=vmem, size = 0x20000, scoped, tag = 'output window, operand 0']
    %10 = vsyncpa [#allocation3], 0
    %s11 = scalar_lea.sflag [#allocation3], 1
    %12 = vsyncpa %s11, 0
    %13 = vsyncpa [#allocation6], 0
    %14 = vsyncpa [#allocation4], 0
    %s15 = scalar_lea.sflag [#allocation4], 1
    %16 = vsyncpa %s15, 0
    loop: start=0, step=1, limit=4
    $region2: #{tpu_custom_call.1} parent=1 // loop_pre_header
      _
    $region3: #{tpu_custom_call.1} parent=1 // loop_header
      %s18 = sphi 0, %s22
      %p19 = scmp.ge.s32.totalorder %s18, 4
      %s28 = sphi 0, %s30
      %s31 = sphi 0, %s28
      %s32 = sphi 0, %s31
      %s48 = sphi 0, %s32
      %s52 = sphi 0, %s52
      %s54 = sphi 0, %s52
      %s55 = sphi 0, %s54
      %s69 = sphi 0, %s55
      %s73 = sphi 0, %s73
      %s75 = sphi 0, %s73
      %s76 = sphi 0, %s75
      %s90 = sphi 0, %s76
      %s94 = sphi 0, %s94
      %s96 = sphi 0, %s94
      %s97 = sphi 0, %s96
      %s111 = sphi 0, %s97
      %s115 = sphi 0, %s115
      %s117 = sphi 0, %s115
      %s118 = sphi 0, %s117
      %s132 = sphi 0, %s118
      %s138 = sphi 0, %s140
      %s141 = sphi 0, %s138
      %s142 = sphi 0, %s141
      %s158 = sphi 0, %s142
    $region4: #{tpu_custom_call.1} parent=1 // loop_header_branch
      %21 = sbr.rel (%p19) target = $region8
    $region5: #{tpu_custom_call.1} parent=1 // loop_body
      %s23 = ssub.s32 %s18, 1
      %s24 = ssub.s32 %s18, 2
      %s25 = sadd.s32 %s18, 1
      %s26 = ssub.s32 %s18, %s25
      %p27 = scmp.eq.s32.totalorder %s26, 0
      %s29 = sadd.s32 %s28, 1
      %s30 = scalar_select %p27, %s28, %s29
      %p33 = pneg %p27
      %p34 = scmp.eq.s32.totalorder %s18, 1
      %p35 = por %p33, %p34
      %p36 = scmp.ne.s32.totalorder %s28, %s31
      %p37 = scmp.eq.s32.totalorder %s18, 0
      %p38 = por %p36, %p37
      %p39 = scmp.ne.s32.totalorder %s28, %s31
      %p40 = scmp.eq.s32.totalorder %s23, 1
      %p41 = por %p39, %p40
      %p42 = scmp.ne.s32.totalorder %s31, %s32
      %p43 = scmp.eq.s32.totalorder %s23, 0
      %p44 = por %p42, %p43
      %p45 = scmp.ne.s32.totalorder %s31, %s32
      %p46 = scmp.eq.s32.totalorder %s24, 1
      %p47 = por %p45, %p46
      %p49 = scmp.ne.s32.totalorder %s32, %s48
      %p50 = scmp.eq.s32.totalorder %s24, 0
      %p51 = por %p49, %p50
      %s53 = sadd.s32 %s52, 1
      %p56 = scmp.eq.s32.totalorder %s18, 1
      %p57 = scmp.ne.s32.totalorder %s52, %s54
      %p58 = scmp.eq.s32.totalorder %s18, 0
      %p59 = por %p57, %p58
      %p60 = scmp.ne.s32.totalorder %s52, %s54
      %p61 = scmp.eq.s32.totalorder %s23, 1
      %p62 = por %p60, %p61
      %p63 = scmp.ne.s32.totalorder %s54, %s55
      %p64 = scmp.eq.s32.totalorder %s23, 0
      %p65 = por %p63, %p64
      %p66 = scmp.ne.s32.totalorder %s54, %s55
      %p67 = scmp.eq.s32.totalorder %s24, 1
      %p68 = por %p66, %p67
      %p70 = scmp.ne.s32.totalorder %s55, %s69
      %p71 = scmp.eq.s32.totalorder %s24, 0
      %p72 = por %p70, %p71
      %s74 = sadd.s32 %s73, 1
      %p77 = scmp.eq.s32.totalorder %s18, 1
      %p78 = scmp.ne.s32.totalorder %s73, %s75
      %p79 = scmp.eq.s32.totalorder %s18, 0
      %p80 = por %p78, %p79
      %p81 = scmp.ne.s32.totalorder %s73, %s75
      %p82 = scmp.eq.s32.totalorder %s23, 1
      %p83 = por %p81, %p82
      %p84 = scmp.ne.s32.totalorder %s75, %s76
      %p85 = scmp.eq.s32.totalorder %s23, 0
      %p86 = por %p84, %p85
      %p87 = scmp.ne.s32.totalorder %s75, %s76
      %p88 = scmp.eq.s32.totalorder %s24, 1
      %p89 = por %p87, %p88
      %p91 = scmp.ne.s32.totalorder %s76, %s90
      %p92 = scmp.eq.s32.totalorder %s24, 0
      %p93 = por %p91, %p92
      %s95 = sadd.s32 %s94, 1
      %p98 = scmp.eq.s32.totalorder %s18, 1
      %p99 = scmp.ne.s32.totalorder %s94, %s96
      %p100 = scmp.eq.s32.totalorder %s18, 0
      %p101 = por %p99, %p100
      %p102 = scmp.ne.s32.totalorder %s94, %s96
      %p103 = scmp.eq.s32.totalorder %s23, 1
      %p104 = por %p102, %p103
      %p105 = scmp.ne.s32.totalorder %s96, %s97
      %p106 = scmp.eq.s32.totalorder %s23, 0
      %p107 = por %p105, %p106
      %p108 = scmp.ne.s32.totalorder %s96, %s97
      %p109 = scmp.eq.s32.totalorder %s24, 1
      %p110 = por %p108, %p109
      %p112 = scmp.ne.s32.totalorder %s97, %s111
      %p113 = scmp.eq.s32.totalorder %s24, 0
      %p114 = por %p112, %p113
      %s116 = sadd.s32 %s115, 1
      %p119 = scmp.eq.s32.totalorder %s18, 1
      %p120 = scmp.ne.s32.totalorder %s115, %s117
      %p121 = scmp.eq.s32.totalorder %s18, 0
      %p122 = por %p120, %p121
      %p123 = scmp.ne.s32.totalorder %s115, %s117
      %p124 = scmp.eq.s32.totalorder %s23, 1
      %p125 = por %p123, %p124
      %p126 = scmp.ne.s32.totalorder %s117, %s118
      %p127 = scmp.eq.s32.totalorder %s23, 0
      %p128 = por %p126, %p127
      %p129 = scmp.ne.s32.totalorder %s117, %s118
      %p130 = scmp.eq.s32.totalorder %s24, 1
      %p131 = por %p129, %p130
      %p133 = scmp.ne.s32.totalorder %s118, %s132
      %p134 = scmp.eq.s32.totalorder %s24, 0
      %p135 = por %p133, %p134
      %s136 = ssub.s32 %s18, %s25
      %p137 = scmp.eq.s32.totalorder %s136, 0
      %s139 = sadd.s32 %s138, 1
      %s140 = scalar_select %p137, %s138, %s139
      %p143 = pneg %p137
      %p144 = scmp.eq.s32.totalorder %s18, 1
      %p145 = por %p143, %p144
      %p146 = scmp.ne.s32.totalorder %s138, %s141
      %p147 = scmp.eq.s32.totalorder %s18, 0
      %p148 = por %p146, %p147
      %p149 = scmp.ne.s32.totalorder %s138, %s141
      %p150 = scmp.eq.s32.totalorder %s23, 1
      %p151 = por %p149, %p150
      %p152 = scmp.ne.s32.totalorder %s141, %s142
      %p153 = scmp.eq.s32.totalorder %s23, 0
      %p154 = por %p152, %p153
      %p155 = scmp.ne.s32.totalorder %s141, %s142
      %p156 = scmp.eq.s32.totalorder %s24, 1
      %p157 = por %p155, %p156
      %p159 = scmp.ne.s32.totalorder %s142, %s158
      %p160 = scmp.eq.s32.totalorder %s24, 0
      %p161 = por %p159, %p160
      %p162 = scmp.le.s32.totalorder 1, %s18
      %p163 = scmp.lt.s32.totalorder %s18, 3
      %p164 = pnand %p162, %p163
      %p165 = pneg %p164
      // Predicated region
      $region9: #{tpu_custom_call.1} parent=5 // pred_check
        _
      $region10: #{tpu_custom_call.1} parent=5 // pred_check_branch
        %167 = sbr.rel (%p164) target = $region12
      $region11: #{tpu_custom_call.1} parent=5 // pred_region
        %s168 = ssub.s32 %s18, 1
        // Predicated region
        $region13: #{tpu_custom_call.1} parent=11 // pred_check
          %p169 = pneg %p65
        $region14: #{tpu_custom_call.1} parent=11 // pred_check_branch
          %171 = sbr.rel (%p169) target = $region16
        $region15: #{tpu_custom_call.1} parent=11 // pred_region
          %s173 = ssub.s32 2048, 2048
          %174 = vsyncadd [#allocation6], %s173
          %s175 = sshll.u32 [#allocation5], 4
          %s176 = int_to_ptr.vmem [resolvable:$true] %s175
          %181 = dma.hbm_to_vmem [thread:$0]  %s1, 2048, %s176, [#allocation6], 128, 128, 8
        $region16: #{tpu_custom_call.1} parent=11 // pred_fallthru
          _
        // Predicated region
        $region17: #{tpu_custom_call.1} parent=11 // pred_check
          %p182 = pneg %p86
        $region18: #{tpu_custom_call.1} parent=11 // pred_check_branch
          %184 = sbr.rel (%p182) target = $region20
        $region19: #{tpu_custom_call.1} parent=11 // pred_region
          _
        $region20: #{tpu_custom_call.1} parent=11 // pred_fallthru
          _
        // Predicated region
        $region21: #{tpu_custom_call.1} parent=11 // pred_check
          %p185 = pneg %p107
        $region22: #{tpu_custom_call.1} parent=11 // pred_check_branch
          %187 = sbr.rel (%p185) target = $region24
        $region23: #{tpu_custom_call.1} parent=11 // pred_region
          %s189 = ssub.s32 2048, 2048
          %190 = vsyncadd [#allocation6], %s189
          %s191 = sshll.u32 [#allocation7], 4
          %s192 = int_to_ptr.vmem [resolvable:$true] %s191
          %197 = dma.hbm_to_vmem [thread:$0]  %s3, 2048, %s192, [#allocation6], 64, 64, 4
        $region24: #{tpu_custom_call.1} parent=11 // pred_fallthru
          _
        // Predicated region
        $region25: #{tpu_custom_call.1} parent=11 // pred_check
          %p198 = pneg %p128
        $region26: #{tpu_custom_call.1} parent=11 // pred_check_branch
          %200 = sbr.rel (%p198) target = $region28
        $region27: #{tpu_custom_call.1} parent=11 // pred_region
          _
        $region28: #{tpu_custom_call.1} parent=11 // pred_fallthru
          _
      $region12: #{tpu_custom_call.1} parent=5 // pred_fallthru
        _
      %p201 = scmp.lt.s32.totalorder %s18, 2
      // Predicated region
      $region29: #{tpu_custom_call.1} parent=5 // pred_check
        %p202 = pneg %p201
      $region30: #{tpu_custom_call.1} parent=5 // pred_check_branch
        %204 = sbr.rel (%p202) target = $region32
      $region31: #{tpu_custom_call.1} parent=5 // pred_region
        // Predicated region
        $region33: #{tpu_custom_call.1} parent=31 // pred_check
          %p205 = pneg %p38
        $region34: #{tpu_custom_call.1} parent=31 // pred_check_branch
          %207 = sbr.rel (%p205) target = $region36
        $region35: #{tpu_custom_call.1} parent=31 // pred_region
          %s208 = sand.u32 %s28, 1
          %s209 = scalar_lea.sflag [#allocation3], %s208
          %s210 = sand.u32 %s28, 1
          %s211 = smul.addr %s210, 128
          %s212 = scalar_lea.vmem [#allocation2], %s211
          %s213 = smul.u32 16, %s18
          %s215 = ssub.s32 2048, 2048
          %216 = vsyncadd %s209, %s215
          %s217 = smul.addr %s213, 128
          %s218 = scalar_lea.hbm %s0, %s217
          %s219 = sshll.u32 %s212, 4
          %s220 = int_to_ptr.vmem [resolvable:$true] %s219
          %225 = dma.hbm_to_vmem [thread:$0]  %s218, 2048, %s220, %s209, 128, 128, 8
        $region36: #{tpu_custom_call.1} parent=31 // pred_fallthru
          _
      $region32: #{tpu_custom_call.1} parent=5 // pred_fallthru
        _
      %p226 = scmp.le.s32.totalorder 1, %s18
      %p227 = scmp.lt.s32.totalorder %s18, 3
      %p228 = pnand %p226, %p227
      %p229 = pneg %p228
      // Predicated region
      $region37: #{tpu_custom_call.1} parent=5 // pred_check
        _
      $region38: #{tpu_custom_call.1} parent=5 // pred_check_branch
        %231 = sbr.rel (%p228) target = $region40
      $region39: #{tpu_custom_call.1} parent=5 // pred_region
        %s232 = ssub.s32 %s18, 1
        %s233 = sand.u32 %s31, 1
        %s234 = scalar_lea.sflag [#allocation3], %s233
        %s235 = sand.u32 %s31, 1
        %s236 = smul.addr %s235, 128
        %s237 = scalar_lea.vmem [#allocation2], %s236
        // Predicated region
        $region41: #{tpu_custom_call.1} parent=39 // pred_check
          %p238 = pneg %p44
        $region42: #{tpu_custom_call.1} parent=39 // pred_check_branch
          %240 = sbr.rel (%p238) target = $region44
        $region43: #{tpu_custom_call.1} parent=39 // pred_region
          %241 = dma.done %s234, 2048
        $region44: #{tpu_custom_call.1} parent=39 // pred_fallthru
          _
        // Predicated region
        $region45: #{tpu_custom_call.1} parent=39 // pred_check
          %p242 = pneg %p65
        $region46: #{tpu_custom_call.1} parent=39 // pred_check_branch
          %244 = sbr.rel (%p242) target = $region48
        $region47: #{tpu_custom_call.1} parent=39 // pred_region
          %245 = dma.done [#allocation6], 2048
        $region48: #{tpu_custom_call.1} parent=39 // pred_fallthru
          _
        // Predicated region
        $region49: #{tpu_custom_call.1} parent=39 // pred_check
          %p246 = pneg %p107
        $region50: #{tpu_custom_call.1} parent=39 // pred_check_branch
          %248 = sbr.rel (%p246) target = $region52
        $region51: #{tpu_custom_call.1} parent=39 // pred_region
          %249 = dma.done [#allocation6], 2048
        $region52: #{tpu_custom_call.1} parent=39 // pred_fallthru
          _
        %s250 = sand.u32 %s31, 1
        %s251 = scalar_lea.sflag [#allocation3], %s250
        %s252 = sand.u32 %s31, 1
        %s253 = smul.addr %s252, 128
        %s254 = scalar_lea.vmem [#allocation2], %s253
        %p255 = pneg %p44
        %p256 = pneg %p41
        %p257 = pneg %p65
        %p258 = pneg %p62
        %p259 = pneg %p86
        %p260 = pneg %p83
        %p261 = pneg %p107
        %p262 = pneg %p104
        %p263 = pneg %p128
        %p264 = pneg %p125
        %p265 = pneg %p154
        %p266 = pneg %p151
        %s267 = sand.u32 %s141, 1
        %s268 = scalar_lea.sflag [#allocation4], %s267
        %s269 = sand.u32 %s141, 1
        %s270 = smul.addr %s269, 128
        %s271 = scalar_lea.vmem [#allocation8], %s270
        %s272 = smul.u32 16, %s23
        %s273 = smul.u32 16, %s23
        %v275 = vld [vmem:[%s237] sm:$0xff]
        %v276 = vld [vmem:[%s237 + $0x8] sm:$0xff]
        %v277 = vld [vmem:[%s237 + $0x10] sm:$0xff]
        %v278 = vld [vmem:[%s237 + $0x18] sm:$0xff]
        %v279 = vld [vmem:[%s237 + $0x20] sm:$0xff]
        %v280 = vld [vmem:[%s237 + $0x28] sm:$0xff]
        %v281 = vld [vmem:[%s237 + $0x30] sm:$0xff]
        %v282 = vld [vmem:[%s237 + $0x38] sm:$0xff]
        %v283 = vld [vmem:[%s237 + $0x40] sm:$0xff]
        %v284 = vld [vmem:[%s237 + $0x48] sm:$0xff]
        %v285 = vld [vmem:[%s237 + $0x50] sm:$0xff]
        %v286 = vld [vmem:[%s237 + $0x58] sm:$0xff]
        %v287 = vld [vmem:[%s237 + $0x60] sm:$0xff]
        %v288 = vld [vmem:[%s237 + $0x68] sm:$0xff]
        %v289 = vld [vmem:[%s237 + $0x70] sm:$0xff]
        %v290 = vld [vmem:[%s237 + $0x78] sm:$0xff]
        %291 = vadd.xlane.f32.xlu0 %v275
        %v292 = vpop.xlane.xlu0 %291
        %293 = vadd.xlane.f32.xlu0 %v276
        %v294 = vpop.xlane.xlu0 %293
        %295 = vadd.xlane.f32.xlu0 %v277
        %v296 = vpop.xlane.xlu0 %295
        %297 = vadd.xlane.f32.xlu0 %v278
        %v298 = vpop.xlane.xlu0 %297
        %299 = vadd.xlane.f32.xlu0 %v279
        %v300 = vpop.xlane.xlu0 %299
        %301 = vadd.xlane.f32.xlu0 %v280
        %v302 = vpop.xlane.xlu0 %301
        %303 = vadd.xlane.f32.xlu0 %v281
        %v304 = vpop.xlane.xlu0 %303
        %305 = vadd.xlane.f32.xlu0 %v282
        %v306 = vpop.xlane.xlu0 %305
        %307 = vadd.xlane.f32.xlu0 %v283
        %v308 = vpop.xlane.xlu0 %307
        %309 = vadd.xlane.f32.xlu0 %v284
        %v310 = vpop.xlane.xlu0 %309
        %311 = vadd.xlane.f32.xlu0 %v285
        %v312 = vpop.xlane.xlu0 %311
        %313 = vadd.xlane.f32.xlu0 %v286
        %v314 = vpop.xlane.xlu0 %313
        %315 = vadd.xlane.f32.xlu0 %v287
        %v316 = vpop.xlane.xlu0 %315
        %317 = vadd.xlane.f32.xlu0 %v288
        %v318 = vpop.xlane.xlu0 %317
        %319 = vadd.xlane.f32.xlu0 %v289
        %v320 = vpop.xlane.xlu0 %319
        %321 = vadd.xlane.f32.xlu0 %v290
        %v322 = vpop.xlane.xlu0 %321
        %v323 = vmul.f32 %v292, 0.0078125
        %v324 = vmul.f32 %v294, 0.0078125
        %v325 = vmul.f32 %v296, 0.0078125
        %v326 = vmul.f32 %v298, 0.0078125
        %v327 = vmul.f32 %v300, 0.0078125
        %v328 = vmul.f32 %v302, 0.0078125
        %v329 = vmul.f32 %v304, 0.0078125
        %v330 = vmul.f32 %v306, 0.0078125
        %v331 = vmul.f32 %v308, 0.0078125
        %v332 = vmul.f32 %v310, 0.0078125
        %v333 = vmul.f32 %v312, 0.0078125
        %v334 = vmul.f32 %v314, 0.0078125
        %v335 = vmul.f32 %v316, 0.0078125
        %v336 = vmul.f32 %v318, 0.0078125
        %v337 = vmul.f32 %v320, 0.0078125
        %v338 = vmul.f32 %v322, 0.0078125
        %v339 = vsub.f32 %v275, %v323
        %v340 = vsub.f32 %v276, %v324
        %v341 = vsub.f32 %v277, %v325
        %v342 = vsub.f32 %v278, %v326
        %v343 = vsub.f32 %v279, %v327
        %v344 = vsub.f32 %v280, %v328
        %v345 = vsub.f32 %v281, %v329
        %v346 = vsub.f32 %v282, %v330
        %v347 = vsub.f32 %v283, %v331
        %v348 = vsub.f32 %v284, %v332
        %v349 = vsub.f32 %v285, %v333
        %v350 = vsub.f32 %v286, %v334
        %v351 = vsub.f32 %v287, %v335
        %v352 = vsub.f32 %v288, %v336
        %v353 = vsub.f32 %v289, %v337
        %v354 = vsub.f32 %v290, %v338
        %v355 = vmul.f32 %v339, %v339
        %v356 = vmul.f32 %v340, %v340
        %v357 = vmul.f32 %v341, %v341
        %v358 = vmul.f32 %v342, %v342
        %v359 = vmul.f32 %v343, %v343
        %v360 = vmul.f32 %v344, %v344
        %v361 = vmul.f32 %v345, %v345
        %v362 = vmul.f32 %v346, %v346
        %v363 = vmul.f32 %v347, %v347
        %v364 = vmul.f32 %v348, %v348
        %v365 = vmul.f32 %v349, %v349
        %v366 = vmul.f32 %v350, %v350
        %v367 = vmul.f32 %v351, %v351
        %v368 = vmul.f32 %v352, %v352
        %v369 = vmul.f32 %v353, %v353
        %v370 = vmul.f32 %v354, %v354
        %371 = vadd.xlane.f32.xlu0 %v355
        %v372 = vpop.xlane.xlu0 %371
        %373 = vadd.xlane.f32.xlu0 %v356
        %v374 = vpop.xlane.xlu0 %373
        %375 = vadd.xlane.f32.xlu0 %v357
        %v376 = vpop.xlane.xlu0 %375
        %377 = vadd.xlane.f32.xlu0 %v358
        %v378 = vpop.xlane.xlu0 %377
        %379 = vadd.xlane.f32.xlu0 %v359
        %v380 = vpop.xlane.xlu0 %379
        %381 = vadd.xlane.f32.xlu0 %v360
        %v382 = vpop.xlane.xlu0 %381
        %383 = vadd.xlane.f32.xlu0 %v361
        %v384 = vpop.xlane.xlu0 %383
        %385 = vadd.xlane.f32.xlu0 %v362
        %v386 = vpop.xlane.xlu0 %385
        %387 = vadd.xlane.f32.xlu0 %v363
        %v388 = vpop.xlane.xlu0 %387
        %389 = vadd.xlane.f32.xlu0 %v364
        %v390 = vpop.xlane.xlu0 %389
        %391 = vadd.xlane.f32.xlu0 %v365
        %v392 = vpop.xlane.xlu0 %391
        %393 = vadd.xlane.f32.xlu0 %v366
        %v394 = vpop.xlane.xlu0 %393
        %395 = vadd.xlane.f32.xlu0 %v367
        %v396 = vpop.xlane.xlu0 %395
        %397 = vadd.xlane.f32.xlu0 %v368
        %v398 = vpop.xlane.xlu0 %397
        %399 = vadd.xlane.f32.xlu0 %v369
        %v400 = vpop.xlane.xlu0 %399
        %401 = vadd.xlane.f32.xlu0 %v370
        %v402 = vpop.xlane.xlu0 %401
        %v403 = vmul.f32 %v372, 0.0078125
        %v404 = vmul.f32 %v374, 0.0078125
        %v405 = vmul.f32 %v376, 0.0078125
        %v406 = vmul.f32 %v378, 0.0078125
        %v407 = vmul.f32 %v380, 0.0078125
        %v408 = vmul.f32 %v382, 0.0078125
        %v409 = vmul.f32 %v384, 0.0078125
        %v410 = vmul.f32 %v386, 0.0078125
        %v411 = vmul.f32 %v388, 0.0078125
        %v412 = vmul.f32 %v390, 0.0078125
        %v413 = vmul.f32 %v392, 0.0078125
        %v414 = vmul.f32 %v394, 0.0078125
        %v415 = vmul.f32 %v396, 0.0078125
        %v416 = vmul.f32 %v398, 0.0078125
        %v417 = vmul.f32 %v400, 0.0078125
        %v418 = vmul.f32 %v402, 0.0078125
        %v419 = vadd.f32 %v403, 1e-05
        %v420 = vadd.f32 %v404, 1e-05
        %v421 = vadd.f32 %v405, 1e-05
        %v422 = vadd.f32 %v406, 1e-05
        %v423 = vadd.f32 %v407, 1e-05
        %v424 = vadd.f32 %v408, 1e-05
        %v425 = vadd.f32 %v409, 1e-05
        %v426 = vadd.f32 %v410, 1e-05
        %v427 = vadd.f32 %v411, 1e-05
        %v428 = vadd.f32 %v412, 1e-05
        %v429 = vadd.f32 %v413, 1e-05
        %v430 = vadd.f32 %v414, 1e-05
        %v431 = vadd.f32 %v415, 1e-05
        %v432 = vadd.f32 %v416, 1e-05
        %v433 = vadd.f32 %v417, 1e-05
        %v434 = vadd.f32 %v418, 1e-05
        %v435 = vrsqrt.pop %v419
        %v436 = vrsqrt.pop %v420
        %v437 = vrsqrt.pop %v421
        %v438 = vrsqrt.pop %v422
        %v439 = vrsqrt.pop %v423
        %v440 = vrsqrt.pop %v424
        %v441 = vrsqrt.pop %v425
        %v442 = vrsqrt.pop %v426
        %v443 = vrsqrt.pop %v427
        %v444 = vrsqrt.pop %v428
        %v445 = vrsqrt.pop %v429
        %v446 = vrsqrt.pop %v430
        %v447 = vrsqrt.pop %v431
        %v448 = vrsqrt.pop %v432
        %v449 = vrsqrt.pop %v433
        %v450 = vrsqrt.pop %v434
        %v451 = vmul.f32 %v339, %v435
        %v452 = vmul.f32 %v340, %v436
        %v453 = vmul.f32 %v341, %v437
        %v454 = vmul.f32 %v342, %v438
        %v455 = vmul.f32 %v343, %v439
        %v456 = vmul.f32 %v344, %v440
        %v457 = vmul.f32 %v345, %v441
        %v458 = vmul.f32 %v346, %v442
        %v459 = vmul.f32 %v347, %v443
        %v460 = vmul.f32 %v348, %v444
        %v461 = vmul.f32 %v349, %v445
        %v462 = vmul.f32 %v350, %v446
        %v463 = vmul.f32 %v351, %v447
        %v464 = vmul.f32 %v352, %v448
        %v465 = vmul.f32 %v353, %v449
        %v466 = vmul.f32 %v354, %v450
        %v467 = vpack.c.bf16 %v452, %v451
        %v468 = vpack.c.bf16 %v454, %v453
        %v469 = vpack.c.bf16 %v456, %v455
        %v470 = vpack.c.bf16 %v458, %v457
        %v471 = vpack.c.bf16 %v460, %v459
        %v472 = vpack.c.bf16 %v462, %v461
        %v473 = vpack.c.bf16 %v464, %v463
        %v474 = vpack.c.bf16 %v466, %v465
        %v475 = vld [vmem:[#allocation5] sm:$0xff]
        %v476 = vld [vmem:[#allocation5 + $0x8] sm:$0xff]
        %v477 = vld [vmem:[#allocation5 + $0x10] sm:$0xff]
        %v478 = vld [vmem:[#allocation5 + $0x18] sm:$0xff]
        %v479 = vld [vmem:[#allocation5 + $0x20] sm:$0xff]
        %v480 = vld [vmem:[#allocation5 + $0x28] sm:$0xff]
        %v481 = vld [vmem:[#allocation5 + $0x30] sm:$0xff]
        %v482 = vld [vmem:[#allocation5 + $0x38] sm:$0xff]
        %v483 = vld [vmem:[#allocation5 + $0x40] sm:$0xff]
        %v484 = vld [vmem:[#allocation5 + $0x48] sm:$0xff]
        %v485 = vld [vmem:[#allocation5 + $0x50] sm:$0xff]
        %v486 = vld [vmem:[#allocation5 + $0x58] sm:$0xff]
        %v487 = vld [vmem:[#allocation5 + $0x60] sm:$0xff]
        %v488 = vld [vmem:[#allocation5 + $0x68] sm:$0xff]
        %v489 = vld [vmem:[#allocation5 + $0x70] sm:$0xff]
        %v490 = vld [vmem:[#allocation5 + $0x78] sm:$0xff]
        %v491 = vld [vmem:[%s2] sm:$0x3]
        %v493 = vlaneseq
        %v494 = vshrl.u32 %v493, 7
        %v495 = vsub.s32 0, %v494
        %v496 = vrot.slane %v491, %v495
        %v497 = vlaneseq
        %v498 = vshrl.u32 %v497, 7
        %v499 = vsub.s32 1, %v498
        %v500 = vrot.slane %v491, %v499
        %v519 = vunpack.c.l.b16 %v475
        %v520 = vunpack.c.h.b16 %v475
        %v521 = vunpack.c.l.b16 %v476
        %v522 = vunpack.c.h.b16 %v476
        %v523 = vunpack.c.l.b16 %v477
        %v524 = vunpack.c.h.b16 %v477
        %v525 = vunpack.c.l.b16 %v478
        %v526 = vunpack.c.h.b16 %v478
        %v527 = vunpack.c.l.b16 %v479
        %v528 = vunpack.c.h.b16 %v479
        %v529 = vunpack.c.l.b16 %v480
        %v530 = vunpack.c.h.b16 %v480
        %v531 = vunpack.c.l.b16 %v481
        %v532 = vunpack.c.h.b16 %v481
        %v533 = vunpack.c.l.b16 %v482
        %v534 = vunpack.c.h.b16 %v482
        %v535 = vunpack.c.l.b16 %v483
        %v536 = vunpack.c.h.b16 %v483
        %v537 = vunpack.c.l.b16 %v484
        %v538 = vunpack.c.h.b16 %v484
        %v539 = vunpack.c.l.b16 %v485
        %v540 = vunpack.c.h.b16 %v485
        %v541 = vunpack.c.l.b16 %v486
        %v542 = vunpack.c.h.b16 %v486
        %v543 = vunpack.c.l.b16 %v487
        %v544 = vunpack.c.h.b16 %v487
        %v545 = vunpack.c.l.b16 %v488
        %v546 = vunpack.c.h.b16 %v488
        %v547 = vunpack.c.l.b16 %v489
        %v548 = vunpack.c.h.b16 %v489
        %v549 = vunpack.c.l.b16 %v490
        %v550 = vunpack.c.h.b16 %v490
        %v551 = vpack.c.b16 %v521, %v519
        %v552 = vpack.c.b16 %v522, %v520
        %v553 = vpack.c.b16 %v525, %v523
        %v554 = vpack.c.b16 %v526, %v524
        %v555 = vpack.c.b16 %v529, %v527
        %v556 = vpack.c.b16 %v530, %v528
        %v557 = vpack.c.b16 %v533, %v531
        %v558 = vpack.c.b16 %v534, %v532
        %v559 = vpack.c.b16 %v537, %v535
        %v560 = vpack.c.b16 %v538, %v536
        %v561 = vpack.c.b16 %v541, %v539
        %v562 = vpack.c.b16 %v542, %v540
        %v563 = vpack.c.b16 %v545, %v543
        %v564 = vpack.c.b16 %v546, %v544
        %v565 = vpack.c.b16 %v549, %v547
        %v566 = vpack.c.b16 %v550, %v548
        %583 = vmatprep.subr.bf16.mxu0 %v552
        %584 = vmatpush1.bf16.msra.mxu0 %v551
        %585 = vmatprep.subr.bf16.mxu0 %v554
        %586 = vmatpush1.bf16.msra.mxu0 %v553
        %587 = vmatprep.subr.bf16.mxu0 %v556
        %588 = vmatpush1.bf16.msra.mxu0 %v555
        %589 = vmatprep.subr.bf16.mxu0 %v558
        %590 = vmatpush1.bf16.msra.mxu0 %v557
        %591 = vmatprep.subr.bf16.mxu0 %v560
        %592 = vmatpush1.bf16.msra.mxu0 %v559
        %593 = vmatprep.subr.bf16.mxu0 %v562
        %594 = vmatpush1.bf16.msra.mxu0 %v561
        %595 = vmatprep.subr.bf16.mxu0 %v564
        %596 = vmatpush1.bf16.msra.mxu0 %v563
        %597 = vmatprep.subr.bf16.mxu0 %v566
        %598 = vmatpush1.bf16.msra.mxu0 %v565
        %599 = vmatprep.subr.bf16.mxu0 0
        %600 = vmatpush1.bf16.msra.mxu0 0
        %601 = vmatprep.subr.bf16.mxu0 0
        %602 = vmatpush1.bf16.msra.mxu0 0
        %603 = vmatprep.subr.bf16.mxu0 0
        %604 = vmatpush1.bf16.msra.mxu0 0
        %605 = vmatprep.subr.bf16.mxu0 0
        %606 = vmatpush1.bf16.msra.mxu0 0
        %607 = vmatprep.subr.bf16.mxu0 0
        %608 = vmatpush1.bf16.msra.mxu0 0
        %609 = vmatprep.subr.bf16.mxu0 0
        %610 = vmatpush1.bf16.msra.mxu0 0
        %611 = vmatprep.subr.bf16.mxu0 0
        %612 = vmatpush1.bf16.msra.mxu0 0
        %613 = vmatprep.subr.bf16.mxu0 0
        %614 = vmatpush1.bf16.msra.mxu0 0
        %615 = vmatprep.mubr.bf16.mxu0 0
        %616 = vmatmul.mubr.bf16.gmra.mrb[0].mxu0 %v467
        %v617 = vpop.f32.mrb[0].mxu0
        %v618 = vadd.f32 %v496, %v617
        %v619 = vpop.f32.mrb[0].mxu0
        %v620 = vadd.f32 %v500, %v619
        %v621 = vpop.f32.mrb[0].mxu0
        %v622 = vadd.f32 %v496, %v621
        %v623 = vpop.f32.mrb[0].mxu0
        %v624 = vadd.f32 %v500, %v623
        %625 = vmatprep.mubr.bf16.mxu0 0
        %626 = vmatmul.mubr.bf16.gmra.mrb[0].mxu0 %v468
        %v627 = vpop.f32.mrb[0].mxu0
        %v628 = vadd.f32 %v496, %v627
        %v629 = vpop.f32.mrb[0].mxu0
        %v630 = vadd.f32 %v500, %v629
        %v631 = vpop.f32.mrb[0].mxu0
        %v632 = vadd.f32 %v496, %v631
        %v633 = vpop.f32.mrb[0].mxu0
        %v634 = vadd.f32 %v500, %v633
        %635 = vmatprep.mubr.bf16.mxu0 0
        %636 = vmatmul.mubr.bf16.gmra.mrb[0].mxu0 %v469
        %v637 = vpop.f32.mrb[0].mxu0
        %v638 = vadd.f32 %v496, %v637
        %v639 = vpop.f32.mrb[0].mxu0
        %v640 = vadd.f32 %v500, %v639
        %v641 = vpop.f32.mrb[0].mxu0
        %v642 = vadd.f32 %v496, %v641
        %v643 = vpop.f32.mrb[0].mxu0
        %v644 = vadd.f32 %v500, %v643
        %645 = vmatprep.mubr.bf16.mxu0 0
        %646 = vmatmul.mubr.bf16.gmra.mrb[0].mxu0 %v470
        %v647 = vpop.f32.mrb[0].mxu0
        %v648 = vadd.f32 %v496, %v647
        %v649 = vpop.f32.mrb[0].mxu0
        %v650 = vadd.f32 %v500, %v649
        %v651 = vpop.f32.mrb[0].mxu0
        %v652 = vadd.f32 %v496, %v651
        %v653 = vpop.f32.mrb[0].mxu0
        %v654 = vadd.f32 %v500, %v653
        %655 = vmatprep.mubr.bf16.mxu0 0
        %656 = vmatmul.mubr.bf16.gmra.mrb[0].mxu0 %v471
        %v657 = vpop.f32.mrb[0].mxu0
        %v658 = vadd.f32 %v496, %v657
        %v659 = vpop.f32.mrb[0].mxu0
        %v660 = vadd.f32 %v500, %v659
        %v661 = vpop.f32.mrb[0].mxu0
        %v662 = vadd.f32 %v496, %v661
        %v663 = vpop.f32.mrb[0].mxu0
        %v664 = vadd.f32 %v500, %v663
        %665 = vmatprep.mubr.bf16.mxu0 0
        %666 = vmatmul.mubr.bf16.gmra.mrb[0].mxu0 %v472
        %v667 = vpop.f32.mrb[0].mxu0
        %v668 = vadd.f32 %v496, %v667
        %v669 = vpop.f32.mrb[0].mxu0
        %v670 = vadd.f32 %v500, %v669
        %v671 = vpop.f32.mrb[0].mxu0
        %v672 = vadd.f32 %v496, %v671
        %v673 = vpop.f32.mrb[0].mxu0
        %v674 = vadd.f32 %v500, %v673
        %675 = vmatprep.mubr.bf16.mxu0 0
        %676 = vmatmul.mubr.bf16.gmra.mrb[0].mxu0 %v473
        %v677 = vpop.f32.mrb[0].mxu0
        %v678 = vadd.f32 %v496, %v677
        %v679 = vpop.f32.mrb[0].mxu0
        %v680 = vadd.f32 %v500, %v679
        %v681 = vpop.f32.mrb[0].mxu0
        %v682 = vadd.f32 %v496, %v681
        %v683 = vpop.f32.mrb[0].mxu0
        %v684 = vadd.f32 %v500, %v683
        %685 = vmatprep.mubr.bf16.mxu0 0
        %686 = vmatmul.mubr.bf16.gmra.mrb[0].mxu0 %v474
        %v687 = vpop.f32.mrb[0].mxu0
        %v688 = vadd.f32 %v496, %v687
        %v689 = vpop.f32.mrb[0].mxu0
        %v690 = vadd.f32 %v500, %v689
        %v691 = vpop.f32.mrb[0].mxu0
        %v692 = vadd.f32 %v496, %v691
        %v693 = vpop.f32.mrb[0].mxu0
        %v694 = vadd.f32 %v500, %v693
        %695 = vdwg.mxu0
        %v696 = vmul.f32 %v618, 0.974077
        %v697 = vmul.f32 %v620, 0.974077
        %v698 = vmul.f32 %v622, 0.974077
        %v699 = vmul.f32 %v624, 0.974077
        %v700 = vmul.f32 %v628, 0.974077
        %v701 = vmul.f32 %v630, 0.974077
        %v702 = vmul.f32 %v632, 0.974077
        %v703 = vmul.f32 %v634, 0.974077
        %v704 = vmul.f32 %v638, 0.974077
        %v705 = vmul.f32 %v640, 0.974077
        %v706 = vmul.f32 %v642, 0.974077
        %v707 = vmul.f32 %v644, 0.974077
        %v708 = vmul.f32 %v648, 0.974077
        %v709 = vmul.f32 %v650, 0.974077
        %v710 = vmul.f32 %v652, 0.974077
        %v711 = vmul.f32 %v654, 0.974077
        %v712 = vmul.f32 %v658, 0.974077
        %v713 = vmul.f32 %v660, 0.974077
        %v714 = vmul.f32 %v662, 0.974077
        %v715 = vmul.f32 %v664, 0.974077
        %v716 = vmul.f32 %v668, 0.974077
        %v717 = vmul.f32 %v670, 0.974077
        %v718 = vmul.f32 %v672, 0.974077
        %v719 = vmul.f32 %v674, 0.974077
        %v720 = vmul.f32 %v678, 0.974077
        %v721 = vmul.f32 %v680, 0.974077
        %v722 = vmul.f32 %v682, 0.974077
        %v723 = vmul.f32 %v684, 0.974077
        %v724 = vmul.f32 %v688, 0.974077
        %v725 = vmul.f32 %v690, 0.974077
        %v726 = vmul.f32 %v692, 0.974077
        %v727 = vmul.f32 %v694, 0.974077
        %v728 = vxor.u32 %v696, 2147483648
        %v729 = vxor.u32 %v697, 2147483648
        %v730 = vxor.u32 %v698, 2147483648
        %v731 = vxor.u32 %v699, 2147483648
        %v732 = vxor.u32 %v700, 2147483648
        %v733 = vxor.u32 %v701, 2147483648
        %v734 = vxor.u32 %v702, 2147483648
        %v735 = vxor.u32 %v703, 2147483648
        %v736 = vxor.u32 %v704, 2147483648
        %v737 = vxor.u32 %v705, 2147483648
        %v738 = vxor.u32 %v706, 2147483648
        %v739 = vxor.u32 %v707, 2147483648
        %v740 = vxor.u32 %v708, 2147483648
        %v741 = vxor.u32 %v709, 2147483648
        %v742 = vxor.u32 %v710, 2147483648
        %v743 = vxor.u32 %v711, 2147483648
        %v744 = vxor.u32 %v712, 2147483648
        %v745 = vxor.u32 %v713, 2147483648
        %v746 = vxor.u32 %v714, 2147483648
        %v747 = vxor.u32 %v715, 2147483648
        %v748 = vxor.u32 %v716, 2147483648
        %v749 = vxor.u32 %v717, 2147483648
        %v750 = vxor.u32 %v718, 2147483648
        %v751 = vxor.u32 %v719, 2147483648
        %v752 = vxor.u32 %v720, 2147483648
        %v753 = vxor.u32 %v721, 2147483648
        %v754 = vxor.u32 %v722, 2147483648
        %v755 = vxor.u32 %v723, 2147483648
        %v756 = vxor.u32 %v724, 2147483648
        %v757 = vxor.u32 %v725, 2147483648
        %v758 = vxor.u32 %v726, 2147483648
        %v759 = vxor.u32 %v727, 2147483648
        %v760 = vmul.f32 %v728, 1.442695
        %v761 = vpow.pop %v760
        %v762 = vmul.f32 %v729, 1.442695
        %v763 = vpow.pop %v762
        %v764 = vmul.f32 %v730, 1.442695
        %v765 = vpow.pop %v764
        %v766 = vmul.f32 %v731, 1.442695
        %v767 = vpow.pop %v766
        %v768 = vmul.f32 %v732, 1.442695
        %v769 = vpow.pop %v768
        %v770 = vmul.f32 %v733, 1.442695
        %v771 = vpow.pop %v770
        %v772 = vmul.f32 %v734, 1.442695
        %v773 = vpow.pop %v772
        %v774 = vmul.f32 %v735, 1.442695
        %v775 = vpow.pop %v774
        %v776 = vmul.f32 %v736, 1.442695
        %v777 = vpow.pop %v776
        %v778 = vmul.f32 %v737, 1.442695
        %v779 = vpow.pop %v778
        %v780 = vmul.f32 %v738, 1.442695
        %v781 = vpow.pop %v780
        %v782 = vmul.f32 %v739, 1.442695
        %v783 = vpow.pop %v782
        %v784 = vmul.f32 %v740, 1.442695
        %v785 = vpow.pop %v784
        %v786 = vmul.f32 %v741, 1.442695
        %v787 = vpow.pop %v786
        %v788 = vmul.f32 %v742, 1.442695
        %v789 = vpow.pop %v788
        %v790 = vmul.f32 %v743, 1.442695
        %v791 = vpow.pop %v790
        %v792 = vmul.f32 %v744, 1.442695
        %v793 = vpow.pop %v792
        %v794 = vmul.f32 %v745, 1.442695
        %v795 = vpow.pop %v794
        %v796 = vmul.f32 %v746, 1.442695
        %v797 = vpow.pop %v796
        %v798 = vmul.f32 %v747, 1.442695
        %v799 = vpow.pop %v798
        %v800 = vmul.f32 %v748, 1.442695
        %v801 = vpow.pop %v800
        %v802 = vmul.f32 %v749, 1.442695
        %v803 = vpow.pop %v802
        %v804 = vmul.f32 %v750, 1.442695
        %v805 = vpow.pop %v804
        %v806 = vmul.f32 %v751, 1.442695
        %v807 = vpow.pop %v806
        %v808 = vmul.f32 %v752, 1.442695
        %v809 = vpow.pop %v808
        %v810 = vmul.f32 %v753, 1.442695
        %v811 = vpow.pop %v810
        %v812 = vmul.f32 %v754, 1.442695
        %v813 = vpow.pop %v812
        %v814 = vmul.f32 %v755, 1.442695
        %v815 = vpow.pop %v814
        %v816 = vmul.f32 %v756, 1.442695
        %v817 = vpow.pop %v816
        %v818 = vmul.f32 %v757, 1.442695
        %v819 = vpow.pop %v818
        %v820 = vmul.f32 %v758, 1.442695
        %v821 = vpow.pop %v820
        %v822 = vmul.f32 %v759, 1.442695
        %v823 = vpow.pop %v822
        %v824 = vadd.f32 %v761, 1.0
        %v825 = vadd.f32 %v763, 1.0
        %v826 = vadd.f32 %v765, 1.0
        %v827 = vadd.f32 %v767, 1.0
        %v828 = vadd.f32 %v769, 1.0
        %v829 = vadd.f32 %v771, 1.0
        %v830 = vadd.f32 %v773, 1.0
        %v831 = vadd.f32 %v775, 1.0
        %v832 = vadd.f32 %v777, 1.0
        %v833 = vadd.f32 %v779, 1.0
        %v834 = vadd.f32 %v781, 1.0
        %v835 = vadd.f32 %v783, 1.0
        %v836 = vadd.f32 %v785, 1.0
        %v837 = vadd.f32 %v787, 1.0
        %v838 = vadd.f32 %v789, 1.0
        %v839 = vadd.f32 %v791, 1.0
        %v840 = vadd.f32 %v793, 1.0
        %v841 = vadd.f32 %v795, 1.0
        %v842 = vadd.f32 %v797, 1.0
        %v843 = vadd.f32 %v799, 1.0
        %v844 = vadd.f32 %v801, 1.0
        %v845 = vadd.f32 %v803, 1.0
        %v846 = vadd.f32 %v805, 1.0
        %v847 = vadd.f32 %v807, 1.0
        %v848 = vadd.f32 %v809, 1.0
        %v849 = vadd.f32 %v811, 1.0
        %v850 = vadd.f32 %v813, 1.0
        %v851 = vadd.f32 %v815, 1.0
        %v852 = vadd.f32 %v817, 1.0
        %v853 = vadd.f32 %v819, 1.0
        %v854 = vadd.f32 %v821, 1.0
        %v855 = vadd.f32 %v823, 1.0
        %v856 = vrcp.pop %v824
        %v857 = vmul.f32 1.0, %v856
        %v858 = vrcp.pop %v825
        %v859 = vmul.f32 1.0, %v858
        %v860 = vrcp.pop %v826
        %v861 = vmul.f32 1.0, %v860
        %v862 = vrcp.pop %v827
        %v863 = vmul.f32 1.0, %v862
        %v864 = vrcp.pop %v828
        %v865 = vmul.f32 1.0, %v864
        %v866 = vrcp.pop %v829
        %v867 = vmul.f32 1.0, %v866
        %v868 = vrcp.pop %v830
        %v869 = vmul.f32 1.0, %v868
        %v870 = vrcp.pop %v831
        %v871 = vmul.f32 1.0, %v870
        %v872 = vrcp.pop %v832
        %v873 = vmul.f32 1.0, %v872
        %v874 = vrcp.pop %v833
        %v875 = vmul.f32 1.0, %v874
        %v876 = vrcp.pop %v834
        %v877 = vmul.f32 1.0, %v876
        %v878 = vrcp.pop %v835
        %v879 = vmul.f32 1.0, %v878
        %v880 = vrcp.pop %v836
        %v881 = vmul.f32 1.0, %v880
        %v882 = vrcp.pop %v837
        %v883 = vmul.f32 1.0, %v882
        %v884 = vrcp.pop %v838
        %v885 = vmul.f32 1.0, %v884
        %v886 = vrcp.pop %v839
        %v887 = vmul.f32 1.0, %v886
        %v888 = vrcp.pop %v840
        %v889 = vmul.f32 1.0, %v888
        %v890 = vrcp.pop %v841
        %v891 = vmul.f32 1.0, %v890
        %v892 = vrcp.pop %v842
        %v893 = vmul.f32 1.0, %v892
        %v894 = vrcp.pop %v843
        %v895 = vmul.f32 1.0, %v894
        %v896 = vrcp.pop %v844
        %v897 = vmul.f32 1.0, %v896
        %v898 = vrcp.pop %v845
        %v899 = vmul.f32 1.0, %v898
        %v900 = vrcp.pop %v846
        %v901 = vmul.f32 1.0, %v900
        %v902 = vrcp.pop %v847
        %v903 = vmul.f32 1.0, %v902
        %v904 = vrcp.pop %v848
        %v905 = vmul.f32 1.0, %v904
        %v906 = vrcp.pop %v849
        %v907 = vmul.f32 1.0, %v906
        %v908 = vrcp.pop %v850
        %v909 = vmul.f32 1.0, %v908
        %v910 = vrcp.pop %v851
        %v911 = vmul.f32 1.0, %v910
        %v912 = vrcp.pop %v852
        %v913 = vmul.f32 1.0, %v912
        %v914 = vrcp.pop %v853
        %v915 = vmul.f32 1.0, %v914
        %v916 = vrcp.pop %v854
        %v917 = vmul.f32 1.0, %v916
        %v918 = vrcp.pop %v855
        %v919 = vmul.f32 1.0, %v918
        %v920 = vmul.f32 %v618, %v857
        %v921 = vmul.f32 %v620, %v859
        %v922 = vmul.f32 %v622, %v861
        %v923 = vmul.f32 %v624, %v863
        %v924 = vmul.f32 %v628, %v865
        %v925 = vmul.f32 %v630, %v867
        %v926 = vmul.f32 %v632, %v869
        %v927 = vmul.f32 %v634, %v871
        %v928 = vmul.f32 %v638, %v873
        %v929 = vmul.f32 %v640, %v875
        %v930 = vmul.f32 %v642, %v877
        %v931 = vmul.f32 %v644, %v879
        %v932 = vmul.f32 %v648, %v881
        %v933 = vmul.f32 %v650, %v883
        %v934 = vmul.f32 %v652, %v885
        %v935 = vmul.f32 %v654, %v887
        %v936 = vmul.f32 %v658, %v889
        %v937 = vmul.f32 %v660, %v891
        %v938 = vmul.f32 %v662, %v893
        %v939 = vmul.f32 %v664, %v895
        %v940 = vmul.f32 %v668, %v897
        %v941 = vmul.f32 %v670, %v899
        %v942 = vmul.f32 %v672, %v901
        %v943 = vmul.f32 %v674, %v903
        %v944 = vmul.f32 %v678, %v905
        %v945 = vmul.f32 %v680, %v907
        %v946 = vmul.f32 %v682, %v909
        %v947 = vmul.f32 %v684, %v911
        %v948 = vmul.f32 %v688, %v913
        %v949 = vmul.f32 %v690, %v915
        %v950 = vmul.f32 %v692, %v917
        %v951 = vmul.f32 %v694, %v919
        %v952 = vpack.c.bf16 %v922, %v920
        %v953 = vpack.c.bf16 %v923, %v921
        %v954 = vpack.c.bf16 %v926, %v924
        %v955 = vpack.c.bf16 %v927, %v925
        %v956 = vpack.c.bf16 %v930, %v928
        %v957 = vpack.c.bf16 %v931, %v929
        %v958 = vpack.c.bf16 %v934, %v932
        %v959 = vpack.c.bf16 %v935, %v933
        %v960 = vpack.c.bf16 %v938, %v936
        %v961 = vpack.c.bf16 %v939, %v937
        %v962 = vpack.c.bf16 %v942, %v940
        %v963 = vpack.c.bf16 %v943, %v941
        %v964 = vpack.c.bf16 %v946, %v944
        %v965 = vpack.c.bf16 %v947, %v945
        %v966 = vpack.c.bf16 %v950, %v948
        %v967 = vpack.c.bf16 %v951, %v949
        %v968 = vld [vmem:[#allocation7] sm:$0xf]
        %v969 = vld [vmem:[#allocation7 + $0x4] sm:$0xf]
        %v970 = vld [vmem:[#allocation7 + $0x8] sm:$0xf]
        %v971 = vld [vmem:[#allocation7 + $0xc] sm:$0xf]
        %v972 = vld [vmem:[#allocation7 + $0x10] sm:$0xf]
        %v973 = vld [vmem:[#allocation7 + $0x14] sm:$0xf]
        %v974 = vld [vmem:[#allocation7 + $0x18] sm:$0xf]
        %v975 = vld [vmem:[#allocation7 + $0x1c] sm:$0xf]
        %v976 = vld [vmem:[#allocation7 + $0x20] sm:$0xf]
        %v977 = vld [vmem:[#allocation7 + $0x24] sm:$0xf]
        %v978 = vld [vmem:[#allocation7 + $0x28] sm:$0xf]
        %v979 = vld [vmem:[#allocation7 + $0x2c] sm:$0xf]
        %v980 = vld [vmem:[#allocation7 + $0x30] sm:$0xf]
        %v981 = vld [vmem:[#allocation7 + $0x34] sm:$0xf]
        %v982 = vld [vmem:[#allocation7 + $0x38] sm:$0xf]
        %v983 = vld [vmem:[#allocation7 + $0x3c] sm:$0xf]
        %v984 = vld [vmem:[#allocation7 + $0x40] sm:$0xf]
        %v985 = vld [vmem:[#allocation7 + $0x44] sm:$0xf]
        %v986 = vld [vmem:[#allocation7 + $0x48] sm:$0xf]
        %v987 = vld [vmem:[#allocation7 + $0x4c] sm:$0xf]
        %v988 = vld [vmem:[#allocation7 + $0x50] sm:$0xf]
        %v989 = vld [vmem:[#allocation7 + $0x54] sm:$0xf]
        %v990 = vld [vmem:[#allocation7 + $0x58] sm:$0xf]
        %v991 = vld [vmem:[#allocation7 + $0x5c] sm:$0xf]
        %v992 = vld [vmem:[#allocation7 + $0x60] sm:$0xf]
        %v993 = vld [vmem:[#allocation7 + $0x64] sm:$0xf]
        %v994 = vld [vmem:[#allocation7 + $0x68] sm:$0xf]
        %v995 = vld [vmem:[#allocation7 + $0x6c] sm:$0xf]
        %v996 = vld [vmem:[#allocation7 + $0x70] sm:$0xf]
        %v997 = vld [vmem:[#allocation7 + $0x74] sm:$0xf]
        %v998 = vld [vmem:[#allocation7 + $0x78] sm:$0xf]
        %v999 = vld [vmem:[#allocation7 + $0x7c] sm:$0xf]
        %v1000 = vld [vmem:[%s4] sm:$0x1]
        %v1002 = vlaneseq
        %v1003 = vshrl.u32 %v1002, 7
        %v1004 = vsub.s32 0, %v1003
        %v1005 = vrot.slane %v1000, %v1004
        %v1039 = vunpack.c.l.b16 %v968
        %v1040 = vunpack.c.l.b16 %v969
        %v1041 = vunpack.c.l.b16 %v970
        %v1042 = vunpack.c.l.b16 %v971
        %v1043 = vunpack.c.l.b16 %v972
        %v1044 = vunpack.c.l.b16 %v973
        %v1045 = vunpack.c.l.b16 %v974
        %v1046 = vunpack.c.l.b16 %v975
        %v1047 = vunpack.c.l.b16 %v976
        %v1048 = vunpack.c.l.b16 %v977
        %v1049 = vunpack.c.l.b16 %v978
        %v1050 = vunpack.c.l.b16 %v979
        %v1051 = vunpack.c.l.b16 %v980
        %v1052 = vunpack.c.l.b16 %v981
        %v1053 = vunpack.c.l.b16 %v982
        %v1054 = vunpack.c.l.b16 %v983
        %v1055 = vunpack.c.l.b16 %v984
        %v1056 = vunpack.c.l.b16 %v985
        %v1057 = vunpack.c.l.b16 %v986
        %v1058 = vunpack.c.l.b16 %v987
        %v1059 = vunpack.c.l.b16 %v988
        %v1060 = vunpack.c.l.b16 %v989
        %v1061 = vunpack.c.l.b16 %v990
        %v1062 = vunpack.c.l.b16 %v991
        %v1063 = vunpack.c.l.b16 %v992
        %v1064 = vunpack.c.l.b16 %v993
        %v1065 = vunpack.c.l.b16 %v994
        %v1066 = vunpack.c.l.b16 %v995
        %v1067 = vunpack.c.l.b16 %v996
        %v1068 = vunpack.c.l.b16 %v997
        %v1069 = vunpack.c.l.b16 %v998
        %v1070 = vunpack.c.l.b16 %v999
        %v1071 = vpack.c.b16 %v1040, %v1039
        %v1072 = vpack.c.b16 %v1042, %v1041
        %v1073 = vpack.c.b16 %v1044, %v1043
        %v1074 = vpack.c.b16 %v1046, %v1045
        %v1075 = vpack.c.b16 %v1048, %v1047
        %v1076 = vpack.c.b16 %v1050, %v1049
        %v1077 = vpack.c.b16 %v1052, %v1051
        %v1078 = vpack.c.b16 %v1054, %v1053
        %v1079 = vpack.c.b16 %v1056, %v1055
        %v1080 = vpack.c.b16 %v1058, %v1057
        %v1081 = vpack.c.b16 %v1060, %v1059
        %v1082 = vpack.c.b16 %v1062, %v1061
        %v1083 = vpack.c.b16 %v1064, %v1063
        %v1084 = vpack.c.b16 %v1066, %v1065
        %v1085 = vpack.c.b16 %v1068, %v1067
        %v1086 = vpack.c.b16 %v1070, %v1069
        %1103 = vmatprep.subr.bf16.mxu0 0
        %1104 = vmatpush1.bf16.msra.mxu0 %v1071
        %1105 = vmatprep.subr.bf16.mxu0 0
        %1106 = vmatpush1.bf16.msra.mxu0 %v1072
        %1107 = vmatprep.subr.bf16.mxu0 0
        %1108 = vmatpush1.bf16.msra.mxu0 %v1073
        %1109 = vmatprep.subr.bf16.mxu0 0
        %1110 = vmatpush1.bf16.msra.mxu0 %v1074
        %1111 = vmatprep.subr.bf16.mxu0 0
        %1112 = vmatpush1.bf16.msra.mxu0 %v1075
        %1113 = vmatprep.subr.bf16.mxu0 0
        %1114 = vmatpush1.bf16.msra.mxu0 %v1076
        %1115 = vmatprep.subr.bf16.mxu0 0
        %1116 = vmatpush1.bf16.msra.mxu0 %v1077
        %1117 = vmatprep.subr.bf16.mxu0 0
        %1118 = vmatpush1.bf16.msra.mxu0 %v1078
        %1119 = vmatprep.subr.bf16.mxu0 0
        %1120 = vmatpush1.bf16.msra.mxu0 %v1079
        %1121 = vmatprep.subr.bf16.mxu0 0
        %1122 = vmatpush1.bf16.msra.mxu0 %v1080
        %1123 = vmatprep.subr.bf16.mxu0 0
        %1124 = vmatpush1.bf16.msra.mxu0 %v1081
        %1125 = vmatprep.subr.bf16.mxu0 0
        %1126 = vmatpush1.bf16.msra.mxu0 %v1082
        %1127 = vmatprep.subr.bf16.mxu0 0
        %1128 = vmatpush1.bf16.msra.mxu0 %v1083
        %1129 = vmatprep.subr.bf16.mxu0 0
        %1130 = vmatpush1.bf16.msra.mxu0 %v1084
        %1131 = vmatprep.subr.bf16.mxu0 0
        %1132 = vmatpush1.bf16.msra.mxu0 %v1085
        %1133 = vmatprep.subr.bf16.mxu0 0
        %1134 = vmatpush1.bf16.msra.mxu0 %v1086
        %1135 = vmatprep.mubr.bf16.mxu0 %v953
        %1136 = vmatmul.mubr.bf16.gmra.mrb[0].mxu0 %v952
        %v1137 = vpop.f32.mrb[0].mxu0
        %v1138 = vadd.f32 %v1005, %v1137
        %v1139 = vpop.f32.mrb[0].mxu0
        %v1140 = vpop.f32.mrb[0].mxu0
        %v1141 = vadd.f32 %v1005, %v1140
        %v1142 = vpop.f32.mrb[0].mxu0
        %1143 = vmatprep.mubr.bf16.mxu0 %v955
        %1144 = vmatmul.mubr.bf16.gmra.mrb[0].mxu0 %v954
        %v1145 = vpop.f32.mrb[0].mxu0
        %v1146 = vadd.f32 %v1005, %v1145
        %v1147 = vpop.f32.mrb[0].mxu0
        %v1148 = vpop.f32.mrb[0].mxu0
        %v1149 = vadd.f32 %v1005, %v1148
        %v1150 = vpop.f32.mrb[0].mxu0
        %1151 = vmatprep.mubr.bf16.mxu0 %v957
        %1152 = vmatmul.mubr.bf16.gmra.mrb[0].mxu0 %v956
        %v1153 = vpop.f32.mrb[0].mxu0
        %v1154 = vadd.f32 %v1005, %v1153
        %v1155 = vpop.f32.mrb[0].mxu0
        %v1156 = vpop.f32.mrb[0].mxu0
        %v1157 = vadd.f32 %v1005, %v1156
        %v1158 = vpop.f32.mrb[0].mxu0
        %1159 = vmatprep.mubr.bf16.mxu0 %v959
        %1160 = vmatmul.mubr.bf16.gmra.mrb[0].mxu0 %v958
        %v1161 = vpop.f32.mrb[0].mxu0
        %v1162 = vadd.f32 %v1005, %v1161
        %v1163 = vpop.f32.mrb[0].mxu0
        %v1164 = vpop.f32.mrb[0].mxu0
        %v1165 = vadd.f32 %v1005, %v1164
        %v1166 = vpop.f32.mrb[0].mxu0
        %1167 = vmatprep.mubr.bf16.mxu0 %v961
        %1168 = vmatmul.mubr.bf16.gmra.mrb[0].mxu0 %v960
        %v1169 = vpop.f32.mrb[0].mxu0
        %v1170 = vadd.f32 %v1005, %v1169
        %v1171 = vpop.f32.mrb[0].mxu0
        %v1172 = vpop.f32.mrb[0].mxu0
        %v1173 = vadd.f32 %v1005, %v1172
        %v1174 = vpop.f32.mrb[0].mxu0
        %1175 = vmatprep.mubr.bf16.mxu0 %v963
        %1176 = vmatmul.mubr.bf16.gmra.mrb[0].mxu0 %v962
        %v1177 = vpop.f32.mrb[0].mxu0
        %v1178 = vadd.f32 %v1005, %v1177
        %v1179 = vpop.f32.mrb[0].mxu0
        %v1180 = vpop.f32.mrb[0].mxu0
        %v1181 = vadd.f32 %v1005, %v1180
        %v1182 = vpop.f32.mrb[0].mxu0
        %1183 = vmatprep.mubr.bf16.mxu0 %v965
        %1184 = vmatmul.mubr.bf16.gmra.mrb[0].mxu0 %v964
        %v1185 = vpop.f32.mrb[0].mxu0
        %v1186 = vadd.f32 %v1005, %v1185
        %v1187 = vpop.f32.mrb[0].mxu0
        %v1188 = vpop.f32.mrb[0].mxu0
        %v1189 = vadd.f32 %v1005, %v1188
        %v1190 = vpop.f32.mrb[0].mxu0
        %1191 = vmatprep.mubr.bf16.mxu0 %v967
        %1192 = vmatmul.mubr.bf16.gmra.mrb[0].mxu0 %v966
        %v1193 = vpop.f32.mrb[0].mxu0
        %v1194 = vadd.f32 %v1005, %v1193
        %v1195 = vpop.f32.mrb[0].mxu0
        %v1196 = vpop.f32.mrb[0].mxu0
        %v1197 = vadd.f32 %v1005, %v1196
        %v1198 = vpop.f32.mrb[0].mxu0
        %1199 = vdwg.mxu0
        %v1200 = vadd.f32 %v275, %v1138
        %v1201 = vadd.f32 %v276, %v1141
        %v1202 = vadd.f32 %v277, %v1146
        %v1203 = vadd.f32 %v278, %v1149
        %v1204 = vadd.f32 %v279, %v1154
        %v1205 = vadd.f32 %v280, %v1157
        %v1206 = vadd.f32 %v281, %v1162
        %v1207 = vadd.f32 %v282, %v1165
        %v1208 = vadd.f32 %v283, %v1170
        %v1209 = vadd.f32 %v284, %v1173
        %v1210 = vadd.f32 %v285, %v1178
        %v1211 = vadd.f32 %v286, %v1181
        %v1212 = vadd.f32 %v287, %v1186
        %v1213 = vadd.f32 %v288, %v1189
        %v1214 = vadd.f32 %v289, %v1194
        %v1215 = vadd.f32 %v290, %v1197
        %1216 = vst [vmem:[%s271] sm:$0xff] %v1200
        %1217 = vst [vmem:[%s271 + $0x8] sm:$0xff] %v1201
        %1218 = vst [vmem:[%s271 + $0x10] sm:$0xff] %v1202
        %1219 = vst [vmem:[%s271 + $0x18] sm:$0xff] %v1203
        %1220 = vst [vmem:[%s271 + $0x20] sm:$0xff] %v1204
        %1221 = vst [vmem:[%s271 + $0x28] sm:$0xff] %v1205
        %1222 = vst [vmem:[%s271 + $0x30] sm:$0xff] %v1206
        %1223 = vst [vmem:[%s271 + $0x38] sm:$0xff] %v1207
        %1224 = vst [vmem:[%s271 + $0x40] sm:$0xff] %v1208
        %1225 = vst [vmem:[%s271 + $0x48] sm:$0xff] %v1209
        %1226 = vst [vmem:[%s271 + $0x50] sm:$0xff] %v1210
        %1227 = vst [vmem:[%s271 + $0x58] sm:$0xff] %v1211
        %1228 = vst [vmem:[%s271 + $0x60] sm:$0xff] %v1212
        %1229 = vst [vmem:[%s271 + $0x68] sm:$0xff] %v1213
        %1230 = vst [vmem:[%s271 + $0x70] sm:$0xff] %v1214
        %1231 = vst [vmem:[%s271 + $0x78] sm:$0xff] %v1215
        %s1232 = sand.u32 %s141, 1
        %s1233 = scalar_lea.sflag [#allocation4], %s1232
        %s1234 = sand.u32 %s141, 1
        %s1235 = smul.addr %s1234, 128
        %s1236 = scalar_lea.vmem [#allocation8], %s1235
        // Predicated region
        $region53: #{tpu_custom_call.1} parent=39 // pred_check
          %p1237 = pneg %p151
        $region54: #{tpu_custom_call.1} parent=39 // pred_check_branch
          %1239 = sbr.rel (%p1237) target = $region56
        $region55: #{tpu_custom_call.1} parent=39 // pred_region
          %s1240 = smul.u32 16, %s23
          %s1242 = ssub.s32 2048, 2048
          %1243 = vsyncadd %s1233, %s1242
          %s1244 = smul.addr %s1240, 128
          %s1245 = scalar_lea.hbm %s5, %s1244
          %s1246 = sshll.u32 %s1236, 4
          %s1247 = int_to_ptr.vmem [resolvable:$true] %s1246
          %1252 = dma.vmem_to_hbm [thread:$0]  %s1247, 2048, %s1245, %s1233, 128, 128, 8
        $region56: #{tpu_custom_call.1} parent=39 // pred_fallthru
          _
      $region40: #{tpu_custom_call.1} parent=5 // pred_fallthru
        _
      %p1253 = scmp.le.s32.totalorder 2, %s18
      // Predicated region
      $region57: #{tpu_custom_call.1} parent=5 // pred_check
        %p1254 = pneg %p1253
      $region58: #{tpu_custom_call.1} parent=5 // pred_check_branch
        %1256 = sbr.rel (%p1254) target = $region60
      $region59: #{tpu_custom_call.1} parent=5 // pred_region
        %s1257 = ssub.s32 %s18, 2
        // Predicated region
        $region61: #{tpu_custom_call.1} parent=59 // pred_check
          %p1258 = pneg %p157
        $region62: #{tpu_custom_call.1} parent=59 // pred_check_branch
          %1260 = sbr.rel (%p1258) target = $region64
        $region63: #{tpu_custom_call.1} parent=59 // pred_region
          %s1261 = sand.u32 %s142, 1
          %s1262 = scalar_lea.sflag [#allocation4], %s1261
          %s1263 = sand.u32 %s142, 1
          %s1264 = smul.addr %s1263, 128
          %s1265 = scalar_lea.vmem [#allocation8], %s1264
          %1266 = dma.done %s1262, 2048
        $region64: #{tpu_custom_call.1} parent=59 // pred_fallthru
          _
      $region60: #{tpu_custom_call.1} parent=5 // pred_fallthru
        _
    $region6: #{tpu_custom_call.1} parent=1 // loop_footer
      %s22 = sadd.s32 1, %s18
    $region7: #{tpu_custom_call.1} parent=1 // loop_footer_branch
      %17 = sbr.rel target = $region3
    $region8: #{tpu_custom_call.1} parent=1 // loop_exit
      _
    %1267 = vsyncpa [#allocation3], 1
    %s1268 = scalar_lea.sflag [#allocation3], 1
    %1269 = vsyncpa %s1268, 1
    %1270 = vsyncpa [#allocation6], 1
    %1271 = vsyncpa [#allocation4], 1
    %s1272 = scalar_lea.sflag [#allocation4], 1
    %1273 = vsyncpa %s1272, 1

</llo_original>
